<compile_context>
chip_gen: v7x
topology: tpu7x:2x2x1
jax: 0.10.0
libtpu: 0.0.40
codegen_flags: <defaults>
</compile_context>

<pallas_src>
import functools

import jax
import jax.numpy as jnp
from jax.experimental import pallas as pl
from jax.experimental.pallas import tpu as pltpu


def _inverse_kl_partial_kernel(x1_ref, x2_ref, out_ref, *, inv_temp):
    # Promote to f32; temperature via multiply (f32 divide is expensive on VPU).
    x1 = x1_ref[...].astype(jnp.float32) * inv_temp
    x2 = x2_ref[...].astype(jnp.float32) * inv_temp

    # Stabilized softmax pieces for both inputs (class axis = lane axis).
    z1 = x1 - jnp.max(x1, axis=-1, keepdims=True)
    s1 = jnp.sum(jnp.exp(z1), axis=-1, keepdims=True)          # (TN, 1)

    z2 = x2 - jnp.max(x2, axis=-1, keepdims=True)
    e2 = jnp.exp(z2)
    s2 = jnp.sum(e2, axis=-1, keepdims=True)                    # (TN, 1)

    # sum_c p2*(log p2 - log p1)
    #   = (1/s2) * sum_c e2*(z2 - z1)  +  log(s1) - log(s2)
    # (uses sum_c e2/s2 == 1; log(p2) never materialized per element)
    inner = jnp.sum(e2 * (z2 - z1), axis=-1, keepdims=True)     # (TN, 1)
    row_kl = inner / s2 + jnp.log(s1 / s2)                      # (TN, 1)

    partial = jnp.sum(row_kl)                                   # this tile's KL sum
    out_ref[...] = jnp.full(out_ref.shape, partial, dtype=jnp.float32)


def _pick_row_tile(n, c, vmem_budget_bytes=24 * 1024 * 1024):
    # Budget ~12 live (row, C) f32 slabs per tile: 2 inputs x 2 pipeline buffers
    # plus in-kernel temporaries. Stays well inside v7x's 64 MiB physical VMEM.
    per_row = 12 * c * 4
    cap = max(8, vmem_budget_bytes // max(per_row, 1))
    tn = min(n, 1024, cap)
    tn = max(8, (tn // 8) * 8)
    # Shrink to an exact divisor of n (multiples of 8) so no ragged tail tiles.
    while tn > 8 and n % tn != 0:
        tn -= 8
    if n % tn != 0:
        tn = n  # fall back to a single full-batch tile (block == full array dims)
    return tn


def inverse_kl_div_loss(output_1, output_2, *, regularizer=1.0,
                        denom_stabilizer=0.1, temperature=1.0):
    assert output_1.shape == output_2.shape
    n, c = output_1.shape
    tn = _pick_row_tile(n, c)
    num_tiles = n // tn

    kernel = functools.partial(_inverse_kl_partial_kernel,
                               inv_temp=1.0 / float(temperature))

    grid_spec = pltpu.PrefetchScalarGridSpec(
        num_scalar_prefetch=0,
        grid=(num_tiles,),
        in_specs=[
            pl.BlockSpec((tn, c), lambda i: (i, 0)),
            pl.BlockSpec((tn, c), lambda i: (i, 0)),
        ],
        # Per-tile partial sum in a layout-safe (8, 128) f32 block.
        out_specs=pl.BlockSpec((1, 8, 128), lambda i: (i, 0, 0)),
    )

    in_bytes = 2 * n * c * jnp.dtype(output_1.dtype).itemsize
    out_bytes = num_tiles * 8 * 128 * 4

    partials = pl.pallas_call(
        kernel,
        out_shape=jax.ShapeDtypeStruct((num_tiles, 8, 128), jnp.float32),
        grid_spec=grid_spec,
        compiler_params=pltpu.CompilerParams(
            dimension_semantics=("parallel",),
            vmem_limit_bytes=48 * 1024 * 1024,
        ),
        cost_estimate=pl.CostEstimate(
            flops=10 * n * c,
            transcendentals=2 * n * c,
            bytes_accessed=in_bytes + out_bytes,
        ),
    )(output_1, output_2)

    kl = jnp.sum(partials[:, 0, 0]) / jnp.float32(n)
    return jnp.float32(regularizer) / (kl + jnp.float32(denom_stabilizer))


def _reference(output_1, output_2, *, regularizer=1.0, denom_stabilizer=0.1,
               temperature=1.0):
    x1 = output_1.astype(jnp.float32) / temperature
    x2 = output_2.astype(jnp.float32) / temperature
    logp1 = jax.nn.log_softmax(x1, axis=1)
    p2 = jax.nn.softmax(x2, axis=1)
    kl = jnp.sum(p2 * (jnp.log(p2) - logp1)) / output_1.shape[0]
    return regularizer / (kl + denom_stabilizer)


if __name__ == "__main__":
    key = jax.random.PRNGKey(0)
    k1, k2 = jax.random.split(key)
    # batch=8 logits over 32 classes (PyTorch dim=1 -> last/lane axis here).
    output_1 = jax.random.normal(k1, (8, 32), dtype=jnp.float32)
    output_2 = jax.random.normal(k2, (8, 32), dtype=jnp.float32)

    result = inverse_kl_div_loss(output_1, output_2,
                                 regularizer=1.0,
                                 denom_stabilizer=0.1,
                                 temperature=1.0)
    result = jax.block_until_ready(result)

    ref = _reference(output_1, output_2)
    assert jnp.allclose(result, ref, rtol=1e-5, atol=1e-5), (result, ref)
    print("KERNEL_OK")
</pallas_src>

<mosaic_0001>
module attributes {stable_mosaic.version = 11 : i64} {
  func.func @_inverse_kl_partial_kernel(%arg0: i32, %arg1: memref<8x32xf32, #tpu.memory_space<vmem>>, %arg2: memref<8x32xf32, #tpu.memory_space<vmem>>, %arg3: memref<1x8x128xf32, #tpu.memory_space<vmem>>) attributes {dimension_semantics = [#tpu.dimension_semantics<parallel>], iteration_bounds = array<i64: 1>, scalar_prefetch = 0 : i64, scratch_operands = 0 : i64, tpu.core_type = #tpu.core_type<tc>, window_params = [{transform_indices = @transform_0, window_bounds = array<i64: 8, 32>}, {transform_indices = @transform_1, window_bounds = array<i64: 8, 32>}, {transform_indices = @transform_2, window_bounds = array<i64: 1, 8, 128>}]} {
    %c0 = arith.constant 0 : index
    %c0_0 = arith.constant 0 : index
    %0 = vector.load %arg1[%c0, %c0_0] : memref<8x32xf32, #tpu.memory_space<vmem>>, vector<8x32xf32>
    %cst = arith.constant 1.000000e+00 : f32
    %1 = vector.broadcast %cst : f32 to vector<8x32xf32>
    %2 = arith.mulf %0, %1 : vector<8x32xf32>
    %c0_1 = arith.constant 0 : index
    %c0_2 = arith.constant 0 : index
    %3 = vector.load %arg2[%c0_1, %c0_2] : memref<8x32xf32, #tpu.memory_space<vmem>>, vector<8x32xf32>
    %cst_3 = arith.constant 1.000000e+00 : f32
    %4 = vector.broadcast %cst_3 : f32 to vector<8x32xf32>
    %5 = arith.mulf %3, %4 : vector<8x32xf32>
    %cst_4 = arith.constant dense<0xFF800000> : vector<8xf32>
    %6 = vector.multi_reduction <maximumf>, %2, %cst_4 [1] : vector<8x32xf32> to vector<8xf32>
    %7 = vector.shape_cast %6 : vector<8xf32> to vector<8x1xf32>
    %8 = vector.broadcast %7 : vector<8x1xf32> to vector<8x32xf32>
    %9 = arith.subf %2, %8 : vector<8x32xf32>
    %10 = math.exp %9 : vector<8x32xf32>
    %cst_5 = arith.constant dense<0.000000e+00> : vector<8xf32>
    %11 = vector.multi_reduction <add>, %10, %cst_5 [1] : vector<8x32xf32> to vector<8xf32>
    %12 = vector.shape_cast %11 : vector<8xf32> to vector<8x1xf32>
    %cst_6 = arith.constant dense<0xFF800000> : vector<8xf32>
    %13 = vector.multi_reduction <maximumf>, %5, %cst_6 [1] : vector<8x32xf32> to vector<8xf32>
    %14 = vector.shape_cast %13 : vector<8xf32> to vector<8x1xf32>
    %15 = vector.broadcast %14 : vector<8x1xf32> to vector<8x32xf32>
    %16 = arith.subf %5, %15 : vector<8x32xf32>
    %17 = math.exp %16 : vector<8x32xf32>
    %cst_7 = arith.constant dense<0.000000e+00> : vector<8xf32>
    %18 = vector.multi_reduction <add>, %17, %cst_7 [1] : vector<8x32xf32> to vector<8xf32>
    %19 = vector.shape_cast %18 : vector<8xf32> to vector<8x1xf32>
    %20 = arith.subf %16, %9 : vector<8x32xf32>
    %21 = arith.mulf %17, %20 : vector<8x32xf32>
    %cst_8 = arith.constant dense<0.000000e+00> : vector<8xf32>
    %22 = vector.multi_reduction <add>, %21, %cst_8 [1] : vector<8x32xf32> to vector<8xf32>
    %23 = vector.shape_cast %22 : vector<8xf32> to vector<8x1xf32>
    %24 = arith.divf %23, %19 : vector<8x1xf32>
    %25 = arith.divf %12, %19 : vector<8x1xf32>
    %26 = math.log %25 : vector<8x1xf32>
    %27 = arith.addf %24, %26 : vector<8x1xf32>
    %28 = vector.shape_cast %27 : vector<8x1xf32> to vector<1x8x1xf32>
    %cst_9 = arith.constant dense<0.000000e+00> : vector<1xf32>
    %29 = vector.multi_reduction <add>, %28, %cst_9 [1, 2] : vector<1x8x1xf32> to vector<1xf32>
    %30 = vector.shape_cast %29 : vector<1xf32> to vector<1x1x1xf32>
    %31 = vector.extract %30[0, 0, 0] : f32 from vector<1x1x1xf32>
    %32 = vector.broadcast %31 : f32 to vector<1x8x128xf32>
    %c0_10 = arith.constant 0 : index
    %c0_11 = arith.constant 0 : index
    %c0_12 = arith.constant 0 : index
    %33 = vector.load %arg3[%c0_10, %c0_11, %c0_12] : memref<1x8x128xf32, #tpu.memory_space<vmem>>, vector<1x8x128xf32>
    tpu.vector_store %arg3[%c0_10, %c0_11, %c0_12], %32 {strides = array<i32>} : memref<1x8x128xf32, #tpu.memory_space<vmem>>, vector<1x8x128xf32>,
    return
  }
  func.func @transform_0(%arg0: i32) -> (i32, i32) {
    %c0_i32 = arith.constant 0 : i32
    %c0_i32_0 = arith.constant 0 : i32
    return %arg0, %c0_i32 : i32, i32
  }
  func.func @transform_1(%arg0: i32) -> (i32, i32) {
    %c0_i32 = arith.constant 0 : i32
    %c0_i32_0 = arith.constant 0 : i32
    return %arg0, %c0_i32 : i32, i32
  }
  func.func @transform_2(%arg0: i32) -> (i32, i32, i32) {
    %c0_i32 = arith.constant 0 : i32
    %c0_i32_0 = arith.constant 0 : i32
    %c0_i32_1 = arith.constant 0 : i32
    return %arg0, %c0_i32, %c0_i32_0 : i32, i32, i32
  }
}

</mosaic_0001>

<llo_original>
// kernel: tpu_custom_call.1
$region0: #{tpu_custom_call.1}
  #allocation0 [shape = 'u32[]', space=smem, size = 0x4, offset = 0x4, fixed_abs, tag = 'smem constant byte address 0x4 - core index']
  #allocation1 [shape = 'u32[144,128]{1,0:T(1,128)}', space=vmem, size = 0x12000, scoped, tag = 'internal scratch']
  %s0 = inlined_call_operand.hbm [shape: f32[8,32], index: 0, kind: input, shape index: {}]
  %s1 = inlined_call_operand.hbm [shape: f32[8,32], index: 1, kind: input, shape index: {}]
  %s2 = inlined_call_operand.hbm [shape: f32[1,8,128], index: 2, kind: output, shape index: {}]
  %s3 = sld [smem:[#allocation0]]
  $region26: #{tpu_custom_call.1} parent=0
    _
  %s5 = ssub.s32 1, %s3
  %s6 = scalar_select 0, %s5, %s3
  $region1: #{tpu_custom_call.1} parent=0
    #allocation2 [shape = 'u8[4096]{0}', space=vmem, size = 0x1000, scoped, tag = 'input window, operand 0, single buffered']
    #allocation3 [shape = 's32[1]{0}', space=sflag, size = 0x4, scoped, tag = 'scoped memory for tpu_custom_call.1']
    #allocation4 [shape = 's32[1]{0}', space=sflag, size = 0x4, scoped, tag = 'scoped memory for tpu_custom_call.1']
    #allocation5 [shape = 'u8[4096]{0}', space=vmem, size = 0x1000, scoped, tag = 'input window, operand 1, single buffered']
    #allocation6 [shape = 's32[1]{0}', space=sflag, size = 0x4, scoped, tag = 'scoped memory for tpu_custom_call.1']
    #allocation7 [shape = 'u8[4096]{0}', space=vmem, size = 0x1000, scoped, tag = 'output window, operand 0, single buffered']
    %7 = vsyncpa [#allocation3], 0
    %8 = vsyncpa [#allocation6], 0
    %9 = vsyncpa [#allocation4], 0
    // Predicated region
    $region2: #{tpu_custom_call.1} parent=1 // pred_check
      _
    $region3: #{tpu_custom_call.1} parent=1 // pred_check_branch
      %11 = sbr.rel (0) target = $region5
    $region4: #{tpu_custom_call.1} parent=1 // pred_region
      %s13 = ssub.s32 128, 128
      %14 = vsyncadd [#allocation3], %s13
      %s16 = sshll.u32 [#allocation2], 4
      %s17 = int_to_ptr.vmem [resolvable:$true] %s16
      %19 = dma.hbm_to_vmem [thread:$0]  %s0, 128, %s17, [#allocation3]
    $region5: #{tpu_custom_call.1} parent=1 // pred_fallthru
      _
    // Predicated region
    $region6: #{tpu_custom_call.1} parent=1 // pred_check
      _
    $region7: #{tpu_custom_call.1} parent=1 // pred_check_branch
      %21 = sbr.rel (0) target = $region9
    $region8: #{tpu_custom_call.1} parent=1 // pred_region
      %s23 = ssub.s32 128, 128
      %24 = vsyncadd [#allocation6], %s23
      %s26 = sshll.u32 [#allocation5], 4
      %s27 = int_to_ptr.vmem [resolvable:$true] %s26
      %29 = dma.hbm_to_vmem [thread:$0]  %s1, 128, %s27, [#allocation6]
    $region9: #{tpu_custom_call.1} parent=1 // pred_fallthru
      _
    // Predicated region
    $region10: #{tpu_custom_call.1} parent=1 // pred_check
      _
    $region11: #{tpu_custom_call.1} parent=1 // pred_check_branch
      %31 = sbr.rel (0) target = $region13
    $region12: #{tpu_custom_call.1} parent=1 // pred_region
      %32 = dma.done [#allocation3], 128
    $region13: #{tpu_custom_call.1} parent=1 // pred_fallthru
      _
    // Predicated region
    $region14: #{tpu_custom_call.1} parent=1 // pred_check
      _
    $region15: #{tpu_custom_call.1} parent=1 // pred_check_branch
      %34 = sbr.rel (0) target = $region17
    $region16: #{tpu_custom_call.1} parent=1 // pred_region
      %35 = dma.done [#allocation6], 128
    $region17: #{tpu_custom_call.1} parent=1 // pred_fallthru
      _
    %v36 = vld [vmem:[#allocation2] sm:$0xff]
    %v37 = vld [vmem:[#allocation5] sm:$0xff]
    %vm38 = vcmask 261120
    %v39 = vsel %vm38, %v36, -inf
    %40 = vmax.xlane.f32.xlu0 %v39
    %v41 = vpop.xlane.xlu0 %40
    %v42 = vsub.f32 %v36, %v41
    %v43 = vmul.f32 %v42, 1.442695
    %v44 = vpow.pop %v43
    %v45 = vsel %vm38, %v44, 0.0
    %46 = vadd.xlane.f32.xlu0 %v45
    %v47 = vpop.xlane.xlu0 %46
    %v48 = vsel %vm38, %v37, -inf
    %49 = vmax.xlane.f32.xlu0 %v48
    %v50 = vpop.xlane.xlu0 %49
    %v51 = vsub.f32 %v37, %v50
    %v52 = vmul.f32 %v51, 1.442695
    %v53 = vpow.pop %v52
    %v54 = vsel %vm38, %v53, 0.0
    %55 = vadd.xlane.f32.xlu0 %v54
    %v56 = vpop.xlane.xlu0 %55
    %v57 = vsub.f32 %v51, %v42
    %v58 = vmul.f32 %v53, %v57
    %v59 = vsel %vm38, %v58, 0.0
    %60 = vadd.xlane.f32.xlu0 %v59
    %v61 = vpop.xlane.xlu0 %60
    %v62 = vrcp.pop %v56
    %v63 = vmul.f32 %v61, %v62
    %v64 = vmul.f32 %v47, %v62
    %v65 = vlog2.pop %v64
    %v66 = vmul.f32 %v65, 0.6931472
    %v67 = vadd.f32 %v63, %v66
    %vm68 = vcmask 7168
    %v69 = vsel %vm68, %v67, 0.0
    %70 = vadd.xlane.f32.xlu0 %v69
    %v71 = vpop.xlane.xlu0 %70
    %v72 = vrot.slane %v71, 4
    %v73 = vadd.f32 %v71, %v72
    %v74 = vrot.slane %v73, 2
    %v75 = vadd.f32 %v73, %v74
    %v76 = vrot.slane %v75, 1
    %v77 = vadd.f32 %v75, %v76
    %s78 = vtos %v77
    %v79 = vstv %s78
    %80 = vst [vmem:[#allocation7] sm:$0xff] %v79
    // Predicated region
    $region18: #{tpu_custom_call.1} parent=1 // pred_check
      _
    $region19: #{tpu_custom_call.1} parent=1 // pred_check_branch
      %82 = sbr.rel (0) target = $region21
    $region20: #{tpu_custom_call.1} parent=1 // pred_region
      %s84 = ssub.s32 128, 128
      %85 = vsyncadd [#allocation4], %s84
      %s87 = sshll.u32 [#allocation7], 4
      %s88 = int_to_ptr.vmem [resolvable:$true] %s87
      %90 = dma.vmem_to_hbm [thread:$0]  %s88, 128, %s2, [#allocation4]
    $region21: #{tpu_custom_call.1} parent=1 // pred_fallthru
      _
    // Predicated region
    $region22: #{tpu_custom_call.1} parent=1 // pred_check
      _
    $region23: #{tpu_custom_call.1} parent=1 // pred_check_branch
      %92 = sbr.rel (0) target = $region25
    $region24: #{tpu_custom_call.1} parent=1 // pred_region
      %93 = dma.done [#allocation4], 128
    $region25: #{tpu_custom_call.1} parent=1 // pred_fallthru
      _
    %94 = vsyncpa [#allocation3], 1
    %95 = vsyncpa [#allocation6], 1
    %96 = vsyncpa [#allocation4], 1

</llo_original>
